<compile_context>
chip_gen: v5e
topology: v5e:2x2
jax: 0.10.0
libtpu: 0.0.40
codegen_flags: <defaults>
</compile_context>

<pallas_src>
import functools
import numpy as np

import jax
import jax.numpy as jnp
from jax import lax
from jax.experimental import pallas as pl
from jax.experimental.pallas import tpu as pltpu

RMS_EPS = 1e-6
ROPE_THETA = 10000.0
NEG_INF = -1e30                      # only ever applied to f32 score matrices
VMEM_LIMIT = 48 * 1024 * 1024        # safe on v5e/v6e/v7x; raise to ~96MB on v5e/v6e


# ----------------------------- Pallas kernels ------------------------------ #

def _rmsnorm_matmul_kernel(x_ref, ln_ref, w_ref, o_ref, xn_ref):
    """Fused RMSNorm(x) @ W.  Grid: (row tiles, output-column tiles); the normed
    activations are computed once per row tile (j == 0) and cached in VMEM."""
    @pl.when(pl.program_id(1) == 0)
    def _():
        x = x_ref[...].astype(jnp.float32)
        var = jnp.mean(x * x, axis=-1, keepdims=True)
        xn = x * lax.rsqrt(var + RMS_EPS) * ln_ref[...].astype(jnp.float32)
        xn_ref[...] = xn.astype(xn_ref.dtype)      # MXU operand dtype (e.g. bf16)

    o_ref[...] = jnp.dot(xn_ref[...], w_ref[...],
                         preferred_element_type=jnp.float32).astype(o_ref.dtype)


def _flash_attn_oproj_kernel(x_ref, q_ref, k_ref, v_ref, wo_ref,
                             cos_q_ref, sin_q_ref, cos_k_ref, sin_k_ref,
                             o_ref,
                             qr_ref, m_ref, l_ref, acc_ref, out_acc_ref,
                             *, scale):
    """Causal flash attention with the output projection + residual fused in.

    Grid: (batch, q_tile, head, kv) -- head and kv are reduction axes carried in
    VMEM scratch; out_acc accumulates sum_h attn_h @ wo[h] for the resident
    (tile_q, H) output block."""
    qi = pl.program_id(1)
    h = pl.program_id(2)
    kv = pl.program_id(3)
    nh = pl.num_programs(2)
    nkv = pl.num_programs(3)

    tile_q = q_ref.shape[0]
    tile_kv = k_ref.shape[0]
    half = q_ref.shape[1] // 2

    q_off = qi * tile_q
    kv_off = kv * tile_kv

    @pl.when(jnp.logical_and(h == 0, kv == 0))
    def _():
        out_acc_ref[...] = jnp.zeros_like(out_acc_ref)

    @pl.when(kv == 0)
    def _():
        q = q_ref[...].astype(jnp.float32)
        # RoPE: x*cos + rotate_half(x)*sin  ==  x*cos + roll(x, Dh/2)*sin_signed
        qr = (q * cos_q_ref[...] +
              pltpu.roll(q, shift=half, axis=1) * sin_q_ref[...]) * scale
        qr_ref[...] = qr.astype(qr_ref.dtype)      # bf16 MXU operand
        m_ref[...] = jnp.full(m_ref.shape, NEG_INF, m_ref.dtype)
        l_ref[...] = jnp.zeros_like(l_ref)
        acc_ref[...] = jnp.zeros_like(acc_ref)

    def scores():
        k = k_ref[...].astype(jnp.float32)
        kr = (k * cos_k_ref[...] +
              pltpu.roll(k, shift=half, axis=1) * sin_k_ref[...]).astype(k_ref.dtype)
        # q @ k^T without an explicit transpose; f32 accumulation on the MXU.
        return lax.dot_general(qr_ref[...], kr, (((1,), (1,)), ((), ())),
                               preferred_element_type=jnp.float32)

    def online_update(s):
        m_prev = m_ref[...]
        m_new = jnp.maximum(m_prev, jnp.max(s, axis=-1, keepdims=True))
        alpha = jnp.exp(m_prev - m_new)
        p = jnp.exp(s - m_new)
        l_ref[...] = alpha * l_ref[...] + jnp.sum(p, axis=-1, keepdims=True)
        acc_ref[...] = alpha * acc_ref[...] + jnp.dot(
            p.astype(v_ref.dtype), v_ref[...], preferred_element_type=jnp.float32)
        m_ref[...] = m_new

    last_col = kv_off + tile_kv - 1
    live = kv_off <= q_off + tile_q - 1          # tile not entirely in the future
    on_diag = jnp.logical_and(live, last_col > q_off)
    below_diag = last_col <= q_off               # fully unmasked tile

    @pl.when(on_diag)
    def _():
        s = scores()
        row = q_off + lax.broadcasted_iota(jnp.int32, s.shape, 0)
        col = kv_off + lax.broadcasted_iota(jnp.int32, s.shape, 1)
        online_update(jnp.where(col <= row, s, NEG_INF))

    @pl.when(below_diag)
    def _():
        online_update(scores())                  # no mask / iota work at all

    @pl.when(kv == nkv - 1)
    def _():
        inv = 1.0 / l_ref[...]                   # exact reciprocal (accuracy fix)
        attn = (acc_ref[...] * inv).astype(wo_ref.dtype)
        out_acc_ref[...] += jnp.dot(attn, wo_ref[...],
                                    preferred_element_type=jnp.float32)

    @pl.when(jnp.logical_and(kv == nkv - 1, h == nh - 1))
    def _():
        o_ref[...] = (x_ref[...].astype(jnp.float32) +
                      out_acc_ref[...]).astype(o_ref.dtype)


def _mlp_fused_kernel(x_ref, ln_ref, wg_ref, wu_ref, wd_ref,
                      o_ref, sim_ref, xn_ref, acc_ref):
    """post-attention LN + SwiGLU MLP (reduction over intermediate tiles) +
    residual + cosine similarity."""
    j = pl.program_id(1)

    @pl.when(j == 0)
    def _():
        x = x_ref[...].astype(jnp.float32)
        var = jnp.mean(x * x, axis=-1, keepdims=True)
        xn = x * lax.rsqrt(var + RMS_EPS) * ln_ref[...].astype(jnp.float32)
        xn_ref[...] = xn.astype(xn_ref.dtype)     # cached once, bf16 MXU operand
        acc_ref[...] = jnp.zeros_like(acc_ref)

    xn = xn_ref[...]
    g = jnp.dot(xn, wg_ref[...], preferred_element_type=jnp.float32)
    u = jnp.dot(xn, wu_ref[...], preferred_element_type=jnp.float32)
    hh = (g * jax.nn.sigmoid(g)) * u              # SiLU(gate) * up, f32
    acc_ref[...] += jnp.dot(hh.astype(wd_ref.dtype), wd_ref[...],
                            preferred_element_type=jnp.float32)

    @pl.when(j == pl.num_programs(1) - 1)
    def _():
        r = x_ref[...].astype(jnp.float32)
        out = r + acc_ref[...]
        o_ref[...] = out.astype(o_ref.dtype)
        num = jnp.sum(r * out, axis=-1, keepdims=True)
        den = jnp.sum(r * r, axis=-1, keepdims=True) * \
              jnp.sum(out * out, axis=-1, keepdims=True)
        sim = num * lax.rsqrt(jnp.maximum(den, 1e-16))
        # lane-dense similarity output (avoid width-1 masked stores)
        sim_ref[...] = jnp.broadcast_to(sim, sim_ref.shape)


# ----------------------------- Wrappers ------------------------------------ #

def fused_rmsnorm_matmul(x, ln_w, w, *, tile_t, tile_n):
    T, H = x.shape
    N = w.shape[1]
    assert T % tile_t == 0 and N % tile_n == 0
    return pl.pallas_call(
        _rmsnorm_matmul_kernel,
        grid=(T // tile_t, N // tile_n),
        in_specs=[
            pl.BlockSpec((tile_t, H), lambda i, j: (i, 0)),
            pl.BlockSpec((1, H), lambda i, j: (0, 0)),
            pl.BlockSpec((H, tile_n), lambda i, j: (0, j)),
        ],
        out_specs=pl.BlockSpec((tile_t, tile_n), lambda i, j: (i, j)),
        out_shape=jax.ShapeDtypeStruct((T, N), x.dtype),
        scratch_shapes=[pltpu.VMEM((tile_t, H), x.dtype)],   # cached RMSNorm(x)
        compiler_params=pltpu.CompilerParams(
            dimension_semantics=("parallel", "arbitrary"),
            vmem_limit_bytes=VMEM_LIMIT),
    )(x, ln_w.reshape(1, H), w)


def flash_attention_oproj(x, qkv, wo, cos, sin_signed, *, batch, seq, num_heads,
                          head_dim, tile_q, tile_kv):
    """x: [B*S, H] residual.  qkv: [B*S, 3H] (q|k|v).  Returns residual + attn @ wo."""
    T = batch * seq
    H = num_heads * head_dim
    assert seq % tile_q == 0 and seq % tile_kv == 0
    nq = seq // tile_q
    nkv = seq // tile_kv
    scale = 1.0 / float(np.sqrt(head_dim))
    kernel = functools.partial(_flash_attn_oproj_kernel, scale=scale)

    # Head / batch / tile slices selected by index maps directly out of the fused
    # QKV layout -- no host-side reshapes or transposes.
    x_spec = pl.BlockSpec((tile_q, H), lambda b, qi, h, kv: (b * nq + qi, 0))
    q_spec = pl.BlockSpec((tile_q, head_dim), lambda b, qi, h, kv: (b * nq + qi, h))
    k_spec = pl.BlockSpec((tile_kv, head_dim),
                          lambda b, qi, h, kv: (b * nkv + kv, num_heads + h))
    v_spec = pl.BlockSpec((tile_kv, head_dim),
                          lambda b, qi, h, kv: (b * nkv + kv, 2 * num_heads + h))
    wo_spec = pl.BlockSpec((head_dim, H), lambda b, qi, h, kv: (h, 0))
    cq_spec = pl.BlockSpec((tile_q, head_dim), lambda b, qi, h, kv: (qi, 0))
    ck_spec = pl.BlockSpec((tile_kv, head_dim), lambda b, qi, h, kv: (kv, 0))

    return pl.pallas_call(
        kernel,
        grid=(batch, nq, num_heads, nkv),
        in_specs=[x_spec, q_spec, k_spec, v_spec, wo_spec,
                  cq_spec, cq_spec, ck_spec, ck_spec],
        out_specs=pl.BlockSpec((tile_q, H), lambda b, qi, h, kv: (b * nq + qi, 0)),
        out_shape=jax.ShapeDtypeStruct((T, H), x.dtype),
        scratch_shapes=[
            pltpu.VMEM((tile_q, head_dim), qkv.dtype),    # RoPE'd, scaled q (bf16)
            pltpu.VMEM((tile_q, 1), jnp.float32),         # running max
            pltpu.VMEM((tile_q, 1), jnp.float32),         # running denom
            pltpu.VMEM((tile_q, head_dim), jnp.float32),  # per-head PV accumulator
            pltpu.VMEM((tile_q, H), jnp.float32),         # fused o-proj accumulator
        ],
        compiler_params=pltpu.CompilerParams(
            dimension_semantics=("parallel", "parallel", "arbitrary", "arbitrary"),
            vmem_limit_bytes=VMEM_LIMIT),
    )(x, qkv, qkv, qkv, wo, cos, sin_signed, cos, sin_signed)


def fused_post_ln_mlp(x, ln_w, w_gate, w_up, w_down, *, tile_t, tile_i):
    T, H = x.shape
    I = w_gate.shape[1]
    assert T % tile_t == 0 and I % tile_i == 0
    return pl.pallas_call(
        _mlp_fused_kernel,
        grid=(T // tile_t, I // tile_i),
        in_specs=[
            pl.BlockSpec((tile_t, H), lambda i, j: (i, 0)),
            pl.BlockSpec((1, H), lambda i, j: (0, 0)),
            pl.BlockSpec((H, tile_i), lambda i, j: (0, j)),
            pl.BlockSpec((H, tile_i), lambda i, j: (0, j)),
            pl.BlockSpec((tile_i, H), lambda i, j: (j, 0)),
        ],
        out_specs=[
            pl.BlockSpec((tile_t, H), lambda i, j: (i, 0)),
            pl.BlockSpec((tile_t, 128), lambda i, j: (i, 0)),
        ],
        out_shape=(jax.ShapeDtypeStruct((T, H), x.dtype),
                   jax.ShapeDtypeStruct((T, 128), jnp.float32)),
        scratch_shapes=[
            pltpu.VMEM((tile_t, H), x.dtype),             # cached RMSNorm(x) (bf16)
            pltpu.VMEM((tile_t, H), jnp.float32),         # down-proj accumulator
        ],
        compiler_params=pltpu.CompilerParams(
            dimension_semantics=("parallel", "arbitrary"),
            vmem_limit_bytes=VMEM_LIMIT),
    )(x, ln_w.reshape(1, H), w_gate, w_up, w_down)


def make_rope_tables(seq, head_dim, dtype=jnp.float32):
    pos = jnp.arange(seq, dtype=jnp.float32)
    inv_freq = 1.0 / (ROPE_THETA ** (
        jnp.arange(0, head_dim, 2, dtype=jnp.float32) / head_dim))
    freqs = pos[:, None] * inv_freq[None, :]
    emb = jnp.concatenate([freqs, freqs], axis=-1)
    cos = jnp.cos(emb).astype(dtype)
    sin = jnp.sin(emb).astype(dtype)
    half = head_dim // 2
    sign = jnp.concatenate([-jnp.ones((half,), dtype), jnp.ones((half,), dtype)])
    sin_signed = sin * sign[None, :]    # rotate_half(x)*sin == roll(x, half)*sin_signed
    return cos, sin, sin_signed


def llama_dlo_decoder_layer(hidden_states, params, rope_tables, *, num_heads,
                            calculate_similarity=True,
                            tile_t=None, tile_n=None, tile_q=None,
                            tile_kv=None, tile_i=None):
    B, S, H = hidden_states.shape
    Dh = H // num_heads
    T = B * S
    I = params["w_gate"].shape[1]
    cos, sin_signed = rope_tables

    # Production defaults: 256-aligned matmul tiles (v6e/v7x 2x256x256 MXU) and a
    # large tile_t to amortize weight streaming; override per-chip as needed.
    tile_t = tile_t or min(T, 512)
    tile_n = tile_n or min(3 * H, 512)
    tile_q = tile_q or min(S, 256)
    tile_kv = tile_kv or min(S, 256)
    tile_i = tile_i or min(I, 512)

    x = hidden_states.reshape(T, H)            # free (contiguous) reshape

    # --- self-attention block: fused input_layernorm + QKV projection ---
    qkv = fused_rmsnorm_matmul(x, params["input_ln_w"], params["wqkv"],
                               tile_t=tile_t, tile_n=tile_n)
    # --- flash attention with o-projection + residual fused into the epilogue ---
    x = flash_attention_oproj(x, qkv, params["wo"], cos, sin_signed,
                              batch=B, seq=S, num_heads=num_heads, head_dim=Dh,
                              tile_q=tile_q, tile_kv=tile_kv)

    # --- MLP block (default dense path) ---
    # TODO(synk): topk_mask/topk_scores sparse-row path not implemented.
    out, sim = fused_post_ln_mlp(x, params["post_ln_w"], params["w_gate"],
                                 params["w_up"], params["w_down"],
                                 tile_t=tile_t, tile_i=tile_i)

    out = out.reshape(B, S, H)
    similarities = sim[:, 0].reshape(B, S) if calculate_similarity else None
    return out, similarities


# ----------------------------- Pure-JAX (f32) reference --------------------- #

def reference(hidden_states, params, num_heads, cos, sin):
    B, S, H = hidden_states.shape
    Dh = H // num_heads
    f32 = jnp.float32

    def rms(x, w):
        xf = x.astype(f32)
        var = jnp.mean(xf * xf, axis=-1, keepdims=True)
        return xf * lax.rsqrt(var + RMS_EPS) * w.astype(f32)

    residual = hidden_states.astype(f32)
    h = rms(hidden_states, params["input_ln_w"])
    wqkv = params["wqkv"].astype(f32)
    q = h @ wqkv[:, :H]
    k = h @ wqkv[:, H:2 * H]
    v = h @ wqkv[:, 2 * H:]

    def heads(t):
        return t.reshape(B, S, num_heads, Dh).transpose(0, 2, 1, 3)

    q, k, v = heads(q), heads(k), heads(v)
    c = cos.astype(f32)[None, None]
    s_ = sin.astype(f32)[None, None]

    def rope(x):
        x1, x2 = x[..., :Dh // 2], x[..., Dh // 2:]
        return x * c + jnp.concatenate([-x2, x1], axis=-1) * s_

    q, k = rope(q), rope(k)
    scores = jnp.einsum("bhqd,bhkd->bhqk", q, k) / jnp.sqrt(float(Dh))
    mask = jnp.tril(jnp.ones((S, S), bool))
    scores = jnp.where(mask, scores, NEG_INF)
    p = jax.nn.softmax(scores, axis=-1)
    o = jnp.einsum("bhqk,bhkd->bhqd", p, v).transpose(0, 2, 1, 3).reshape(B, S, H)
    h1 = residual + o @ params["wo"].astype(f32)

    residual2 = h1
    hn = rms(h1, params["post_ln_w"])
    g = hn @ params["w_gate"].astype(f32)
    u = hn @ params["w_up"].astype(f32)
    m = (g * jax.nn.sigmoid(g) * u) @ params["w_down"].astype(f32)
    out = residual2 + m
    num = jnp.sum(residual2 * out, -1)
    den = jnp.sum(residual2 * residual2, -1) * jnp.sum(out * out, -1)
    sim = num / jnp.sqrt(jnp.maximum(den, 1e-16))
    return out, sim


# ----------------------------- Main ----------------------------------------- #

if __name__ == "__main__":
    # Small shapes, head_dim = 128 so head slices are lane-aligned; tiles chosen to
    # exercise multi-step grids (2 q-tiles x 2 kv-tiles -> skip / masked / unmasked
    # branches; 3 QKV column tiles; 2 MLP intermediate tiles).
    B, S, H, num_heads, inter = 2, 64, 256, 2, 256
    Dh = H // num_heads
    dtype = jnp.bfloat16               # bf16 activations/weights feed the MXU

    key = jax.random.PRNGKey(0)
    ks = jax.random.split(key, 8)
    init = lambda k, shape: (0.05 * jax.random.normal(k, shape, jnp.float32)).astype(dtype)

    # PyTorch nn.Linear weights are [out, in]; stored transposed as [in, out];
    # q/k/v concatenated along output columns.
    params = {
        "input_ln_w": 1.0 + 0.01 * jax.random.normal(ks[0], (H,), jnp.float32),
        "post_ln_w": 1.0 + 0.01 * jax.random.normal(ks[1], (H,), jnp.float32),
        "wqkv": init(ks[2], (H, 3 * H)),
        "wo": init(ks[3], (H, H)),
        "w_gate": init(ks[4], (H, inter)),
        "w_up": init(ks[5], (H, inter)),
        "w_down": init(ks[6], (inter, H)),
    }
    hidden_states = jax.random.normal(ks[7], (B, S, H), jnp.float32).astype(dtype)

    # RoPE tables precomputed once, reused across layer invocations (f32 here;
    # bf16 also supported if VMEM is tight).
    cos, sin, sin_signed = make_rope_tables(S, Dh, dtype=jnp.float32)

    out, sims = llama_dlo_decoder_layer(
        hidden_states, params, (cos, sin_signed), num_heads=num_heads,
        calculate_similarity=True,
        tile_t=64, tile_n=256, tile_q=32, tile_kv=32, tile_i=128)
    out = jax.block_until_ready(out)
    sims = jax.block_until_ready(sims)

    ref_out, ref_sims = reference(hidden_states, params, num_heads, cos, sin)
    # bf16 kernel path vs f32 reference -> bf16-level tolerances.
    np.testing.assert_allclose(np.asarray(out, dtype=np.float32),
                               np.asarray(ref_out), rtol=5e-2, atol=5e-2)
    np.testing.assert_allclose(np.asarray(sims, dtype=np.float32),
                               np.asarray(ref_sims), rtol=5e-2, atol=5e-2)

    print("KERNEL_OK")
</pallas_src>

<mosaic_0001>
module attributes {stable_mosaic.version = 11 : i64} {
  func.func @_rmsnorm_matmul_kernel(%arg0: i32, %arg1: i32, %arg2: memref<64x256xbf16, #tpu.memory_space<vmem>>, %arg3: memref<1x256xf32, #tpu.memory_space<vmem>>, %arg4: memref<256x256xbf16, #tpu.memory_space<vmem>>, %arg5: memref<64x256xbf16, #tpu.memory_space<vmem>>, %arg6: memref<64x256xbf16, #tpu.memory_space<vmem>>) attributes {dimension_semantics = [#tpu.dimension_semantics<parallel>, #tpu.dimension_semantics<arbitrary>], iteration_bounds = array<i64: 2, 3>, scalar_prefetch = 0 : i64, scratch_operands = 1 : i64, tpu.core_type = #tpu.core_type<tc>, window_params = [{transform_indices = @transform_0, window_bounds = array<i64: 64, 256>}, {pipeline_mode = #tpu.pipeline_mode<synchronous>, transform_indices = @transform_1, window_bounds = array<i64: 1, 256>}, {transform_indices = @transform_2, window_bounds = array<i64: 256, 256>}, {transform_indices = @transform_3, window_bounds = array<i64: 64, 256>}]} {
    %c0_i32 = arith.constant 0 : i32
    %0 = arith.cmpi eq, %arg1, %c0_i32 : i32
    %1 = arith.extui %0 : i1 to i32
    %c0_i32_0 = arith.constant 0 : i32
    %2 = arith.cmpi ne, %1, %c0_i32_0 : i32
    scf.if %2 {
      %c0_6 = arith.constant 0 : index
      %c0_7 = arith.constant 0 : index
      %8 = vector.load %arg2[%c0_6, %c0_7] : memref<64x256xbf16, #tpu.memory_space<vmem>>, vector<64x256xbf16>
      %9 = arith.extf %8 : vector<64x256xbf16> to vector<64x256xf32>
      %10 = arith.mulf %9, %9 : vector<64x256xf32>
      %cst_8 = arith.constant dense<0.000000e+00> : vector<64xf32>
      %11 = vector.multi_reduction <add>, %10, %cst_8 [1] : vector<64x256xf32> to vector<64xf32>
      %12 = vector.shape_cast %11 : vector<64xf32> to vector<64x1xf32>
      %cst_9 = arith.constant 2.560000e+02 : f32
      %13 = vector.broadcast %cst_9 : f32 to vector<64x1xf32>
      %14 = arith.divf %12, %13 : vector<64x1xf32>
      %cst_10 = arith.constant 9.99999997E-7 : f32
      %15 = vector.broadcast %cst_10 : f32 to vector<64x1xf32>
      %16 = arith.addf %14, %15 : vector<64x1xf32>
      %17 = math.rsqrt %16 : vector<64x1xf32>
      %18 = vector.broadcast %17 : vector<64x1xf32> to vector<64x256xf32>
      %19 = arith.mulf %9, %18 : vector<64x256xf32>
      %c0_11 = arith.constant 0 : index
      %c0_12 = arith.constant 0 : index
      %20 = vector.load %arg3[%c0_11, %c0_12] : memref<1x256xf32, #tpu.memory_space<vmem>>, vector<1x256xf32>
      %21 = vector.broadcast %20 : vector<1x256xf32> to vector<64x256xf32>
      %22 = arith.mulf %19, %21 : vector<64x256xf32>
      %23 = arith.truncf %22 : vector<64x256xf32> to vector<64x256xbf16>
      %c0_13 = arith.constant 0 : index
      %c0_14 = arith.constant 0 : index
      %24 = vector.load %arg6[%c0_13, %c0_14] : memref<64x256xbf16, #tpu.memory_space<vmem>>, vector<64x256xbf16>
      tpu.vector_store %arg6[%c0_13, %c0_14], %23 {strides = array<i32>} : memref<64x256xbf16, #tpu.memory_space<vmem>>, vector<64x256xbf16>,
    } else {
    }
    %c0 = arith.constant 0 : index
    %c0_1 = arith.constant 0 : index
    %3 = vector.load %arg6[%c0, %c0_1] : memref<64x256xbf16, #tpu.memory_space<vmem>>, vector<64x256xbf16>
    %c0_2 = arith.constant 0 : index
    %c0_3 = arith.constant 0 : index
    %4 = vector.load %arg4[%c0_2, %c0_3] : memref<256x256xbf16, #tpu.memory_space<vmem>>, vector<256x256xbf16>
    %cst = arith.constant dense<0.000000e+00> : vector<64x256xf32>
    %5 = tpu.matmul %3, %4, %cst {dimension_numbers = #tpu.dot_dimension_numbers<[1], [0], [0], [1], [0, 0, 1, 1], [], []>} : vector<64x256xbf16>, vector<256x256xbf16>, vector<64x256xf32> -> vector<64x256xf32>
    %6 = arith.truncf %5 : vector<64x256xf32> to vector<64x256xbf16>
    %c0_4 = arith.constant 0 : index
    %c0_5 = arith.constant 0 : index
    %7 = vector.load %arg5[%c0_4, %c0_5] : memref<64x256xbf16, #tpu.memory_space<vmem>>, vector<64x256xbf16>
    tpu.vector_store %arg5[%c0_4, %c0_5], %6 {strides = array<i32>} : memref<64x256xbf16, #tpu.memory_space<vmem>>, vector<64x256xbf16>,
    return
  }
  func.func @transform_0(%arg0: i32, %arg1: i32) -> (i32, i32) {
    %c0_i32 = arith.constant 0 : i32
    %c0_i32_0 = arith.constant 0 : i32
    return %arg0, %c0_i32 : i32, i32
  }
  func.func @transform_1(%arg0: i32, %arg1: i32) -> (i32, i32) {
    %c0_i32 = arith.constant 0 : i32
    %c0_i32_0 = arith.constant 0 : i32
    %c0_i32_1 = arith.constant 0 : i32
    return %c0_i32, %c0_i32_0 : i32, i32
  }
  func.func @transform_2(%arg0: i32, %arg1: i32) -> (i32, i32) {
    %c0_i32 = arith.constant 0 : i32
    %c0_i32_0 = arith.constant 0 : i32
    return %c0_i32, %arg1 : i32, i32
  }
  func.func @transform_3(%arg0: i32, %arg1: i32) -> (i32, i32) {
    %c0_i32 = arith.constant 0 : i32
    return %arg0, %arg1 : i32, i32
  }
}

</mosaic_0001>

<llo_original>
// kernel: tpu_custom_call.1
$region0: #{tpu_custom_call.1}
  #allocation0 [shape = 'u32[]', space=smem, size = 0x4, offset = 0x4, fixed_abs, tag = 'smem constant byte address 0x4 - core index']
  #allocation1 [shape = 'u32[72,128]{1,0:T(1,128)}', space=vmem, size = 0x9000, scoped, tag = 'internal scratch']
  #allocation2 [shape = 'bf16[64,256]{1,0:T(8,128)(2,1)}', space=vmem, size = 0x8000, scoped, tag = 'scratch operand']
  %s0 = inlined_call_operand.hbm [shape: bf16[128,256], index: 0, kind: input, shape index: {}]
  %s1 = inlined_call_operand.hbm [shape: f32[1,256], index: 1, kind: input, shape index: {}]
  %s2 = inlined_call_operand.hbm [shape: bf16[256,768], index: 2, kind: input, shape index: {}]
  %s3 = inlined_call_operand.hbm [shape: bf16[128,768], index: 3, kind: output, shape index: {}]
  %s4 = sld [smem:[#allocation0]]
  $region61: #{tpu_custom_call.1} parent=0
    _
  %s6 = ssub.s32 1, %s4
  %s7 = scalar_select 0, %s6, %s4
  $region1: #{tpu_custom_call.1} parent=0
    #allocation3 [shape = 'u8[65536]{0}', space=vmem, size = 0x10000, scoped, tag = 'input window, operand 0']
    #allocation4 [shape = 's32[2]{0}', space=sflag, size = 0x8, scoped, tag = 'scoped memory for tpu_custom_call.1']
    #allocation5 [shape = 's32[2]{0}', space=sflag, size = 0x8, scoped, tag = 'scoped memory for tpu_custom_call.1']
    #allocation6 [shape = 'u8[1024]{0}', space=vmem, size = 0x400, scoped, tag = 'input window, operand 1, single buffered']
    #allocation7 [shape = 's32[1]{0}', space=sflag, size = 0x4, scoped, tag = 'scoped memory for tpu_custom_call.1']
    #allocation8 [shape = 'u8[262144]{0}', space=vmem, size = 0x40000, scoped, tag = 'input window, operand 2']
    #allocation9 [shape = 'u8[65536]{0}', space=vmem, size = 0x10000, scoped, tag = 'output window, operand 0']
    %8 = vsyncpa [#allocation4], 0
    %s9 = scalar_lea.sflag [#allocation4], 1
    %10 = vsyncpa %s9, 0
    %11 = vsyncpa [#allocation7], 0
    %12 = vsyncpa [#allocation5], 0
    %s13 = scalar_lea.sflag [#allocation5], 1
    %14 = vsyncpa %s13, 0
    loop: start=0, step=1, limit=8
    $region2: #{tpu_custom_call.1} parent=1 // loop_pre_header
      _
    $region3: #{tpu_custom_call.1} parent=1 // loop_header
      %s16 = sphi 0, %s20
      %p17 = scmp.ge.s32.totalorder %s16, 8
      %s23 = sphi 0, %s35
      %s24 = sphi 0, %s31
      %s25 = sphi 0, %s23
      %s26 = sphi 0, %s24
      %s27 = sphi 0, %s25
      %s28 = sphi 0, %s26
      %s38 = sphi 0, %s40
      %s41 = sphi 0, %s38
      %s42 = sphi 0, %s41
      %s58 = sphi 0, %s42
      %s62 = sphi 0, %s62
      %s64 = sphi 0, %s62
      %s65 = sphi 0, %s64
      %s79 = sphi 0, %s65
      %s85 = sphi 0, %s87
      %s88 = sphi 0, %s85
      %s89 = sphi 0, %s88
      %s105 = sphi 0, %s89
      %s113 = sphi 0, %s115
      %s116 = sphi 0, %s113
      %s117 = sphi 0, %s116
      %s133 = sphi 0, %s117
    $region4: #{tpu_custom_call.1} parent=1 // loop_header_branch
      %19 = sbr.rel (%p17) target = $region8
    $region5: #{tpu_custom_call.1} parent=1 // loop_body
      %s21 = ssub.s32 %s16, 1
      %s22 = ssub.s32 %s16, 2
      %s29 = sadd.s32 1, %s24
      %p30 = scmp.ge.s32.totalorder %s29, 3
      %s31 = scalar_select %p30, 0, %s29
      %s32 = sadd.s32 1, %s23
      %s33 = scalar_select %p30, %s32, %s23
      %p34 = scmp.ge.s32.totalorder %s33, 2
      %s35 = scalar_select %p34, 0, %s33
      %s36 = ssub.s32 %s23, %s35
      %p37 = scmp.eq.s32.totalorder %s36, 0
      %s39 = sadd.s32 %s38, 1
      %s40 = scalar_select %p37, %s38, %s39
      %p43 = pneg %p37
      %p44 = scmp.eq.s32.totalorder %s16, 5
      %p45 = por %p43, %p44
      %p46 = scmp.ne.s32.totalorder %s38, %s41
      %p47 = scmp.eq.s32.totalorder %s16, 0
      %p48 = por %p46, %p47
      %p49 = scmp.ne.s32.totalorder %s38, %s41
      %p50 = scmp.eq.s32.totalorder %s21, 5
      %p51 = por %p49, %p50
      %p52 = scmp.ne.s32.totalorder %s41, %s42
      %p53 = scmp.eq.s32.totalorder %s21, 0
      %p54 = por %p52, %p53
      %p55 = scmp.ne.s32.totalorder %s41, %s42
      %p56 = scmp.eq.s32.totalorder %s22, 5
      %p57 = por %p55, %p56
      %p59 = scmp.ne.s32.totalorder %s42, %s58
      %p60 = scmp.eq.s32.totalorder %s22, 0
      %p61 = por %p59, %p60
      %s63 = sadd.s32 %s62, 1
      %p66 = scmp.eq.s32.totalorder %s16, 5
      %p67 = scmp.ne.s32.totalorder %s62, %s64
      %p68 = scmp.eq.s32.totalorder %s16, 0
      %p69 = por %p67, %p68
      %p70 = scmp.ne.s32.totalorder %s62, %s64
      %p71 = scmp.eq.s32.totalorder %s21, 5
      %p72 = por %p70, %p71
      %p73 = scmp.ne.s32.totalorder %s64, %s65
      %p74 = scmp.eq.s32.totalorder %s21, 0
      %p75 = por %p73, %p74
      %p76 = scmp.ne.s32.totalorder %s64, %s65
      %p77 = scmp.eq.s32.totalorder %s22, 5
      %p78 = por %p76, %p77
      %p80 = scmp.ne.s32.totalorder %s65, %s79
      %p81 = scmp.eq.s32.totalorder %s22, 0
      %p82 = por %p80, %p81
      %s83 = ssub.s32 %s24, %s31
      %p84 = scmp.eq.s32.totalorder %s83, 0
      %s86 = sadd.s32 %s85, 1
      %s87 = scalar_select %p84, %s85, %s86
      %p90 = pneg %p84
      %p91 = scmp.eq.s32.totalorder %s16, 5
      %p92 = por %p90, %p91
      %p93 = scmp.ne.s32.totalorder %s85, %s88
      %p94 = scmp.eq.s32.totalorder %s16, 0
      %p95 = por %p93, %p94
      %p96 = scmp.ne.s32.totalorder %s85, %s88
      %p97 = scmp.eq.s32.totalorder %s21, 5
      %p98 = por %p96, %p97
      %p99 = scmp.ne.s32.totalorder %s88, %s89
      %p100 = scmp.eq.s32.totalorder %s21, 0
      %p101 = por %p99, %p100
      %p102 = scmp.ne.s32.totalorder %s88, %s89
      %p103 = scmp.eq.s32.totalorder %s22, 5
      %p104 = por %p102, %p103
      %p106 = scmp.ne.s32.totalorder %s89, %s105
      %p107 = scmp.eq.s32.totalorder %s22, 0
      %p108 = por %p106, %p107
      %s109 = ssub.s32 %s23, %s35
      %s110 = ssub.s32 %s24, %s31
      %s111 = sor.u32 %s109, %s110
      %p112 = scmp.eq.s32.totalorder %s111, 0
      %s114 = sadd.s32 %s113, 1
      %s115 = scalar_select %p112, %s113, %s114
      %p118 = pneg %p112
      %p119 = scmp.eq.s32.totalorder %s16, 5
      %p120 = por %p118, %p119
      %p121 = scmp.ne.s32.totalorder %s113, %s116
      %p122 = scmp.eq.s32.totalorder %s16, 0
      %p123 = por %p121, %p122
      %p124 = scmp.ne.s32.totalorder %s113, %s116
      %p125 = scmp.eq.s32.totalorder %s21, 5
      %p126 = por %p124, %p125
      %p127 = scmp.ne.s32.totalorder %s116, %s117
      %p128 = scmp.eq.s32.totalorder %s21, 0
      %p129 = por %p127, %p128
      %p130 = scmp.ne.s32.totalorder %s116, %s117
      %p131 = scmp.eq.s32.totalorder %s22, 5
      %p132 = por %p130, %p131
      %p134 = scmp.ne.s32.totalorder %s117, %s133
      %p135 = scmp.eq.s32.totalorder %s22, 0
      %p136 = por %p134, %p135
      %p137 = scmp.le.s32.totalorder 1, %s16
      %p138 = scmp.lt.s32.totalorder %s16, 7
      %p139 = pnand %p137, %p138
      %p140 = pneg %p139
      // Predicated region
      $region9: #{tpu_custom_call.1} parent=5 // pred_check
        _
      $region10: #{tpu_custom_call.1} parent=5 // pred_check_branch
        %142 = sbr.rel (%p139) target = $region12
      $region11: #{tpu_custom_call.1} parent=5 // pred_region
        %s143 = ssub.s32 %s16, 1
        // Predicated region
        $region13: #{tpu_custom_call.1} parent=11 // pred_check
          %p144 = pneg %p75
        $region14: #{tpu_custom_call.1} parent=11 // pred_check_branch
          %146 = sbr.rel (%p144) target = $region16
        $region15: #{tpu_custom_call.1} parent=11 // pred_region
          %148 = vsyncadd [#allocation7], 0
          %s150 = sshll.u32 %s1, 4
          %s151 = int_to_ptr.hbm [resolvable:$true] %s150
          %s152 = sshll.u32 [#allocation6], 4
          %s153 = int_to_ptr.vmem [resolvable:$true] %s152
          %155 = dma.hbm_to_vmem [thread:$0]  %s151, 32, %s153, [#allocation7]
        $region16: #{tpu_custom_call.1} parent=11 // pred_fallthru
          _
      $region12: #{tpu_custom_call.1} parent=5 // pred_fallthru
        _
      %p156 = scmp.lt.s32.totalorder %s16, 6
      // Predicated region
      $region17: #{tpu_custom_call.1} parent=5 // pred_check
        %p157 = pneg %p156
      $region18: #{tpu_custom_call.1} parent=5 // pred_check_branch
        %159 = sbr.rel (%p157) target = $region20
      $region19: #{tpu_custom_call.1} parent=5 // pred_region
        // Predicated region
        $region21: #{tpu_custom_call.1} parent=19 // pred_check
          %p160 = pneg %p48
        $region22: #{tpu_custom_call.1} parent=19 // pred_check_branch
          %162 = sbr.rel (%p160) target = $region24
        $region23: #{tpu_custom_call.1} parent=19 // pred_region
          %s163 = sand.u32 %s16, 1
          %s164 = scalar_lea.sflag [#allocation4], %s163
          %s165 = sand.u32 %s38, 1
          %s166 = smul.addr %s165, 64
          %s167 = scalar_lea.vmem [#allocation3], %s166
          %s168 = smul.u32 8, %s23
          %170 = vsyncadd %s164, 0
          %s171 = smul.addr %s168, 2
          %s172 = smul.addr %s171, 4
          %s173 = scalar_lea.hbm %s0, %s172
          %s174 = sshll.u32 %s173, 4
          %s175 = int_to_ptr.hbm [resolvable:$true] %s174
          %s176 = sshll.u32 %s167, 4
          %s177 = int_to_ptr.vmem [resolvable:$true] %s176
          %182 = dma.hbm_to_vmem [thread:$0]  %s175, 1024, %s177, %s164, 128, 128, 8
        $region24: #{tpu_custom_call.1} parent=19 // pred_fallthru
          _
        // Predicated region
        $region25: #{tpu_custom_call.1} parent=19 // pred_check
          %p183 = pneg %p95
        $region26: #{tpu_custom_call.1} parent=19 // pred_check_branch
          %185 = sbr.rel (%p183) target = $region28
        $region27: #{tpu_custom_call.1} parent=19 // pred_region
          %s186 = sand.u32 %s16, 1
          %s187 = scalar_lea.sflag [#allocation4], %s186
          %s188 = sand.u32 %s85, 1
          %s189 = smul.addr %s188, 256
          %s190 = scalar_lea.vmem [#allocation8], %s189
          %s191 = smul.u32 2, %s24
          %193 = vsyncadd %s187, 0
          %s194 = smul.addr %s191, 4
          %s195 = scalar_lea.hbm %s2, %s194
          %s196 = sshll.u32 %s195, 4
          %s197 = int_to_ptr.hbm [resolvable:$true] %s196
          %s198 = sshll.u32 %s190, 4
          %s199 = int_to_ptr.vmem [resolvable:$true] %s198
          %204 = dma.hbm_to_vmem [thread:$0]  %s197, 4096, %s199, %s187, 384, 128, 8
        $region28: #{tpu_custom_call.1} parent=19 // pred_fallthru
          _
      $region20: #{tpu_custom_call.1} parent=5 // pred_fallthru
        _
      %p205 = scmp.le.s32.totalorder 1, %s16
      %p206 = scmp.lt.s32.totalorder %s16, 7
      %p207 = pnand %p205, %p206
      %p208 = pneg %p207
      // Predicated region
      $region29: #{tpu_custom_call.1} parent=5 // pred_check
        _
      $region30: #{tpu_custom_call.1} parent=5 // pred_check_branch
        %210 = sbr.rel (%p207) target = $region32
      $region31: #{tpu_custom_call.1} parent=5 // pred_region
        %s211 = ssub.s32 %s16, 1
        %s212 = sand.u32 %s21, 1
        %s213 = scalar_lea.sflag [#allocation4], %s212
        %s214 = sand.u32 %s41, 1
        %s215 = smul.addr %s214, 64
        %s216 = scalar_lea.vmem [#allocation3], %s215
        // Predicated region
        $region33: #{tpu_custom_call.1} parent=31 // pred_check
          %p217 = pneg %p54
        $region34: #{tpu_custom_call.1} parent=31 // pred_check_branch
          %219 = sbr.rel (%p217) target = $region36
        $region35: #{tpu_custom_call.1} parent=31 // pred_region
          %221 = dma.done %s213, 1024
        $region36: #{tpu_custom_call.1} parent=31 // pred_fallthru
          _
        // Predicated region
        $region37: #{tpu_custom_call.1} parent=31 // pred_check
          %p222 = pneg %p75
        $region38: #{tpu_custom_call.1} parent=31 // pred_check_branch
          %224 = sbr.rel (%p222) target = $region40
        $region39: #{tpu_custom_call.1} parent=31 // pred_region
          %226 = dma.done [#allocation7], 32
        $region40: #{tpu_custom_call.1} parent=31 // pred_fallthru
          _
        %s227 = sand.u32 %s21, 1
        %s228 = scalar_lea.sflag [#allocation4], %s227
        %s229 = sand.u32 %s88, 1
        %s230 = smul.addr %s229, 256
        %s231 = scalar_lea.vmem [#allocation8], %s230
        // Predicated region
        $region41: #{tpu_custom_call.1} parent=31 // pred_check
          %p232 = pneg %p101
        $region42: #{tpu_custom_call.1} parent=31 // pred_check_branch
          %234 = sbr.rel (%p232) target = $region44
        $region43: #{tpu_custom_call.1} parent=31 // pred_region
          %236 = dma.done %s228, 4096
        $region44: #{tpu_custom_call.1} parent=31 // pred_fallthru
          _
        %s237 = sand.u32 %s21, 1
        %s238 = scalar_lea.sflag [#allocation4], %s237
        %s239 = sand.u32 %s41, 1
        %s240 = smul.addr %s239, 64
        %s241 = scalar_lea.vmem [#allocation3], %s240
        %p242 = pneg %p54
        %p243 = pneg %p51
        %p244 = pneg %p75
        %p245 = pneg %p72
        %s246 = sand.u32 %s21, 1
        %s247 = scalar_lea.sflag [#allocation4], %s246
        %s248 = sand.u32 %s88, 1
        %s249 = smul.addr %s248, 256
        %s250 = scalar_lea.vmem [#allocation8], %s249
        %p251 = pneg %p101
        %p252 = pneg %p98
        %p253 = pneg %p129
        %p254 = pneg %p126
        %s255 = sand.u32 %s116, 1
        %s256 = scalar_lea.sflag [#allocation5], %s255
        %s257 = sand.u32 %s116, 1
        %s258 = smul.addr %s257, 64
        %s259 = scalar_lea.vmem [#allocation9], %s258
        %s260 = smul.u32 8, %s25
        %s261 = smul.u32 2, %s26
        %s262 = smul.u32 8, %s25
        %s263 = smul.u32 2, %s26
        %p264 = scmp.eq.s32.totalorder %s26, 0
        // Predicated region
        $region45: #{tpu_custom_call.1} parent=31 // pred_check
          %p265 = pneg %p264
        $region46: #{tpu_custom_call.1} parent=31 // pred_check_branch
          %267 = sbr.rel (%p265) target = $region48
        $region47: #{tpu_custom_call.1} parent=31 // pred_region
          %v268 = vld [vmem:[%s216] sm:$0xff]
          %v269 = vld [vmem:[%s216 + $0x8] sm:$0xff]
          %v270 = vld [vmem:[%s216 + $0x10] sm:$0xff]
          %v271 = vld [vmem:[%s216 + $0x18] sm:$0xff]
          %v272 = vld [vmem:[%s216 + $0x20] sm:$0xff]
          %v273 = vld [vmem:[%s216 + $0x28] sm:$0xff]
          %v274 = vld [vmem:[%s216 + $0x30] sm:$0xff]
          %v275 = vld [vmem:[%s216 + $0x38] sm:$0xff]
          %v276 = vunpack.c.l.bf16 %v268
          %v277 = vunpack.c.h.bf16 %v268
          %v278 = vunpack.c.l.bf16 %v269
          %v279 = vunpack.c.h.bf16 %v269
          %v280 = vunpack.c.l.bf16 %v270
          %v281 = vunpack.c.h.bf16 %v270
          %v282 = vunpack.c.l.bf16 %v271
          %v283 = vunpack.c.h.bf16 %v271
          %v284 = vunpack.c.l.bf16 %v272
          %v285 = vunpack.c.h.bf16 %v272
          %v286 = vunpack.c.l.bf16 %v273
          %v287 = vunpack.c.h.bf16 %v273
          %v288 = vunpack.c.l.bf16 %v274
          %v289 = vunpack.c.h.bf16 %v274
          %v290 = vunpack.c.l.bf16 %v275
          %v291 = vunpack.c.h.bf16 %v275
          %v292 = vmul.f32 %v276, %v276
          %v293 = vmul.f32 %v277, %v277
          %v294 = vmul.f32 %v278, %v278
          %v295 = vmul.f32 %v279, %v279
          %v296 = vmul.f32 %v280, %v280
          %v297 = vmul.f32 %v281, %v281
          %v298 = vmul.f32 %v282, %v282
          %v299 = vmul.f32 %v283, %v283
          %v300 = vmul.f32 %v284, %v284
          %v301 = vmul.f32 %v285, %v285
          %v302 = vmul.f32 %v286, %v286
          %v303 = vmul.f32 %v287, %v287
          %v304 = vmul.f32 %v288, %v288
          %v305 = vmul.f32 %v289, %v289
          %v306 = vmul.f32 %v290, %v290
          %v307 = vmul.f32 %v291, %v291
          %v308 = vadd.f32 %v292, %v293
          %309 = vadd.xlane.f32.xlu0 %v308
          %v310 = vpop.xlane.xlu0 %309
          %v311 = vadd.f32 %v294, %v295
          %312 = vadd.xlane.f32.xlu0 %v311
          %v313 = vpop.xlane.xlu0 %312
          %v314 = vadd.f32 %v296, %v297
          %315 = vadd.xlane.f32.xlu0 %v314
          %v316 = vpop.xlane.xlu0 %315
          %v317 = vadd.f32 %v298, %v299
          %318 = vadd.xlane.f32.xlu0 %v317
          %v319 = vpop.xlane.xlu0 %318
          %v320 = vadd.f32 %v300, %v301
          %321 = vadd.xlane.f32.xlu0 %v320
          %v322 = vpop.xlane.xlu0 %321
          %v323 = vadd.f32 %v302, %v303
          %324 = vadd.xlane.f32.xlu0 %v323
          %v325 = vpop.xlane.xlu0 %324
          %v326 = vadd.f32 %v304, %v305
          %327 = vadd.xlane.f32.xlu0 %v326
          %v328 = vpop.xlane.xlu0 %327
          %v329 = vadd.f32 %v306, %v307
          %330 = vadd.xlane.f32.xlu0 %v329
          %v331 = vpop.xlane.xlu0 %330
          %v332 = vrcp.pop 256.0
          %v333 = vmul.f32 256.0, %v332
          %v334 = vsub.f32 1.0, %v333
          %v335 = vmul.f32 %v332, %v334
          %v336 = vadd.f32 %v332, %v335
          %vm337 = vweird.f32 %v332
          %v338 = vsel %vm337, %v332, %v336
          %v339 = vmul.f32 %v310, %v338
          %v340 = vmul.f32 %v313, %v338
          %v341 = vmul.f32 %v316, %v338
          %v342 = vmul.f32 %v319, %v338
          %v343 = vmul.f32 %v322, %v338
          %v344 = vmul.f32 %v325, %v338
          %v345 = vmul.f32 %v328, %v338
          %v346 = vmul.f32 %v331, %v338
          %v347 = vadd.f32 %v339, 1e-06
          %v348 = vadd.f32 %v340, 1e-06
          %v349 = vadd.f32 %v341, 1e-06
          %v350 = vadd.f32 %v342, 1e-06
          %v351 = vadd.f32 %v343, 1e-06
          %v352 = vadd.f32 %v344, 1e-06
          %v353 = vadd.f32 %v345, 1e-06
          %v354 = vadd.f32 %v346, 1e-06
          %v355 = vrsqrt.pop %v347
          %v356 = vmul.f32 %v355, %v347
          %v357 = vmul.f32 %v356, %v355
          %v358 = vmul.f32 0.5, %v357
          %v359 = vsub.f32 1.5, %v358
          %v360 = vmul.f32 %v355, %v359
          %vm361 = vweird.f32 %v347
          %vm362 = vweird.f32 %v355
          %vm363 = vmor %vm361, %vm362
          %v364 = vsel %vm363, %v355, %v360
          %v365 = vrsqrt.pop %v348
          %v366 = vmul.f32 %v365, %v348
          %v367 = vmul.f32 %v366, %v365
          %v368 = vmul.f32 0.5, %v367
          %v369 = vsub.f32 1.5, %v368
          %v370 = vmul.f32 %v365, %v369
          %vm371 = vweird.f32 %v348
          %vm372 = vweird.f32 %v365
          %vm373 = vmor %vm371, %vm372
          %v374 = vsel %vm373, %v365, %v370
          %v375 = vrsqrt.pop %v349
          %v376 = vmul.f32 %v375, %v349
          %v377 = vmul.f32 %v376, %v375
          %v378 = vmul.f32 0.5, %v377
          %v379 = vsub.f32 1.5, %v378
          %v380 = vmul.f32 %v375, %v379
          %vm381 = vweird.f32 %v349
          %vm382 = vweird.f32 %v375
          %vm383 = vmor %vm381, %vm382
          %v384 = vsel %vm383, %v375, %v380
          %v385 = vrsqrt.pop %v350
          %v386 = vmul.f32 %v385, %v350
          %v387 = vmul.f32 %v386, %v385
          %v388 = vmul.f32 0.5, %v387
          %v389 = vsub.f32 1.5, %v388
          %v390 = vmul.f32 %v385, %v389
          %vm391 = vweird.f32 %v350
          %vm392 = vweird.f32 %v385
          %vm393 = vmor %vm391, %vm392
          %v394 = vsel %vm393, %v385, %v390
          %v395 = vrsqrt.pop %v351
          %v396 = vmul.f32 %v395, %v351
          %v397 = vmul.f32 %v396, %v395
          %v398 = vmul.f32 0.5, %v397
          %v399 = vsub.f32 1.5, %v398
          %v400 = vmul.f32 %v395, %v399
          %vm401 = vweird.f32 %v351
          %vm402 = vweird.f32 %v395
          %vm403 = vmor %vm401, %vm402
          %v404 = vsel %vm403, %v395, %v400
          %v405 = vrsqrt.pop %v352
          %v406 = vmul.f32 %v405, %v352
          %v407 = vmul.f32 %v406, %v405
          %v408 = vmul.f32 0.5, %v407
          %v409 = vsub.f32 1.5, %v408
          %v410 = vmul.f32 %v405, %v409
          %vm411 = vweird.f32 %v352
          %vm412 = vweird.f32 %v405
          %vm413 = vmor %vm411, %vm412
          %v414 = vsel %vm413, %v405, %v410
          %v415 = vrsqrt.pop %v353
          %v416 = vmul.f32 %v415, %v353
          %v417 = vmul.f32 %v416, %v415
          %v418 = vmul.f32 0.5, %v417
          %v419 = vsub.f32 1.5, %v418
          %v420 = vmul.f32 %v415, %v419
          %vm421 = vweird.f32 %v353
          %vm422 = vweird.f32 %v415
          %vm423 = vmor %vm421, %vm422
          %v424 = vsel %vm423, %v415, %v420
          %v425 = vrsqrt.pop %v354
          %v426 = vmul.f32 %v425, %v354
          %v427 = vmul.f32 %v426, %v425
          %v428 = vmul.f32 0.5, %v427
          %v429 = vsub.f32 1.5, %v428
          %v430 = vmul.f32 %v425, %v429
          %vm431 = vweird.f32 %v354
          %vm432 = vweird.f32 %v425
          %vm433 = vmor %vm431, %vm432
          %v434 = vsel %vm433, %v425, %v430
          %v435 = vmul.f32 %v276, %v364
          %v436 = vmul.f32 %v277, %v364
          %v437 = vmul.f32 %v278, %v374
          %v438 = vmul.f32 %v279, %v374
          %v439 = vmul.f32 %v280, %v384
          %v440 = vmul.f32 %v281, %v384
          %v441 = vmul.f32 %v282, %v394
          %v442 = vmul.f32 %v283, %v394
          %v443 = vmul.f32 %v284, %v404
          %v444 = vmul.f32 %v285, %v404
          %v445 = vmul.f32 %v286, %v414
          %v446 = vmul.f32 %v287, %v414
          %v447 = vmul.f32 %v288, %v424
          %v448 = vmul.f32 %v289, %v424
          %v449 = vmul.f32 %v290, %v434
          %v450 = vmul.f32 %v291, %v434
          %v451 = vld [vmem:[#allocation6] sm:$0x3]
          %v453 = vperm.slane %v451, 0
          %v454 = vperm.slane %v451, 1
          %v457 = vmul.f32 %v435, %v453
          %v458 = vmul.f32 %v436, %v454
          %v459 = vmul.f32 %v437, %v453
          %v460 = vmul.f32 %v438, %v454
          %v461 = vmul.f32 %v439, %v453
          %v462 = vmul.f32 %v440, %v454
          %v463 = vmul.f32 %v441, %v453
          %v464 = vmul.f32 %v442, %v454
          %v465 = vmul.f32 %v443, %v453
          %v466 = vmul.f32 %v444, %v454
          %v467 = vmul.f32 %v445, %v453
          %v468 = vmul.f32 %v446, %v454
          %v469 = vmul.f32 %v447, %v453
          %v470 = vmul.f32 %v448, %v454
          %v471 = vmul.f32 %v449, %v453
          %v472 = vmul.f32 %v450, %v454
          %v473 = vpack.c.bf16 %v458, %v457
          %v474 = vpack.c.bf16 %v460, %v459
          %v475 = vpack.c.bf16 %v462, %v461
          %v476 = vpack.c.bf16 %v464, %v463
          %v477 = vpack.c.bf16 %v466, %v465
          %v478 = vpack.c.bf16 %v468, %v467
          %v479 = vpack.c.bf16 %v470, %v469
          %v480 = vpack.c.bf16 %v472, %v471
          %481 = vst [vmem:[#allocation2] sm:$0xff] %v473
          %482 = vst [vmem:[#allocation2 + $0x8] sm:$0xff] %v474
          %483 = vst [vmem:[#allocation2 + $0x10] sm:$0xff] %v475
          %484 = vst [vmem:[#allocation2 + $0x18] sm:$0xff] %v476
          %485 = vst [vmem:[#allocation2 + $0x20] sm:$0xff] %v477
          %486 = vst [vmem:[#allocation2 + $0x28] sm:$0xff] %v478
          %487 = vst [vmem:[#allocation2 + $0x30] sm:$0xff] %v479
          %488 = vst [vmem:[#allocation2 + $0x38] sm:$0xff] %v480
        $region48: #{tpu_custom_call.1} parent=31 // pred_fallthru
          _
        %v489 = vld [vmem:[#allocation2] sm:$0xff]
        %v490 = vld [vmem:[#allocation2 + $0x8] sm:$0xff]
        %v491 = vld [vmem:[#allocation2 + $0x10] sm:$0xff]
        %v492 = vld [vmem:[#allocation2 + $0x18] sm:$0xff]
        %v493 = vld [vmem:[#allocation2 + $0x20] sm:$0xff]
        %v494 = vld [vmem:[#allocation2 + $0x28] sm:$0xff]
        %v495 = vld [vmem:[#allocation2 + $0x30] sm:$0xff]
        %v496 = vld [vmem:[#allocation2 + $0x38] sm:$0xff]
        %v497 = vld [vmem:[%s231] sm:$0xff]
        %v498 = vld [vmem:[%s231 + $0x8] sm:$0xff]
        %v499 = vld [vmem:[%s231 + $0x10] sm:$0xff]
        %v500 = vld [vmem:[%s231 + $0x18] sm:$0xff]
        %v501 = vld [vmem:[%s231 + $0x20] sm:$0xff]
        %v502 = vld [vmem:[%s231 + $0x28] sm:$0xff]
        %v503 = vld [vmem:[%s231 + $0x30] sm:$0xff]
        %v504 = vld [vmem:[%s231 + $0x38] sm:$0xff]
        %v505 = vld [vmem:[%s231 + $0x40] sm:$0xff]
        %v506 = vld [vmem:[%s231 + $0x48] sm:$0xff]
        %v507 = vld [vmem:[%s231 + $0x50] sm:$0xff]
        %v508 = vld [vmem:[%s231 + $0x58] sm:$0xff]
        %v509 = vld [vmem:[%s231 + $0x60] sm:$0xff]
        %v510 = vld [vmem:[%s231 + $0x68] sm:$0xff]
        %v511 = vld [vmem:[%s231 + $0x70] sm:$0xff]
        %v512 = vld [vmem:[%s231 + $0x78] sm:$0xff]
        %v513 = vld [vmem:[%s231 + $0x80] sm:$0xff]
        %v514 = vld [vmem:[%s231 + $0x88] sm:$0xff]
        %v515 = vld [vmem:[%s231 + $0x90] sm:$0xff]
        %v516 = vld [vmem:[%s231 + $0x98] sm:$0xff]
        %v517 = vld [vmem:[%s231 + $0xa0] sm:$0xff]
        %v518 = vld [vmem:[%s231 + $0xa8] sm:$0xff]
        %v519 = vld [vmem:[%s231 + $0xb0] sm:$0xff]
        %v520 = vld [vmem:[%s231 + $0xb8] sm:$0xff]
        %v521 = vld [vmem:[%s231 + $0xc0] sm:$0xff]
        %v522 = vld [vmem:[%s231 + $0xc8] sm:$0xff]
        %v523 = vld [vmem:[%s231 + $0xd0] sm:$0xff]
        %v524 = vld [vmem:[%s231 + $0xd8] sm:$0xff]
        %v525 = vld [vmem:[%s231 + $0xe0] sm:$0xff]
        %v526 = vld [vmem:[%s231 + $0xe8] sm:$0xff]
        %v527 = vld [vmem:[%s231 + $0xf0] sm:$0xff]
        %v528 = vld [vmem:[%s231 + $0xf8] sm:$0xff]
        %v537 = vunpack.c.l.b16 %v489
        %v538 = vunpack.c.h.b16 %v489
        %v539 = vunpack.c.l.b16 %v490
        %v540 = vunpack.c.h.b16 %v490
        %v541 = vunpack.c.l.b16 %v491
        %v542 = vunpack.c.h.b16 %v491
        %v543 = vunpack.c.l.b16 %v492
        %v544 = vunpack.c.h.b16 %v492
        %v545 = vunpack.c.l.b16 %v493
        %v546 = vunpack.c.h.b16 %v493
        %v547 = vunpack.c.l.b16 %v494
        %v548 = vunpack.c.h.b16 %v494
        %v549 = vunpack.c.l.b16 %v495
        %v550 = vunpack.c.h.b16 %v495
        %v551 = vunpack.c.l.b16 %v496
        %v552 = vunpack.c.h.b16 %v496
        %v553 = vpack.c.b16 %v539, %v537
        %v554 = vpack.c.b16 %v540, %v538
        %v555 = vpack.c.b16 %v543, %v541
        %v556 = vpack.c.b16 %v544, %v542
        %v557 = vpack.c.b16 %v547, %v545
        %v558 = vpack.c.b16 %v548, %v546
        %v559 = vpack.c.b16 %v551, %v549
        %v560 = vpack.c.b16 %v552, %v550
        %v601 = vunpack.c.l.b16 %v497
        %v602 = vunpack.c.h.b16 %v497
        %v603 = vunpack.c.l.b16 %v498
        %v604 = vunpack.c.h.b16 %v498
        %v605 = vunpack.c.l.b16 %v499
        %v606 = vunpack.c.h.b16 %v499
        %v607 = vunpack.c.l.b16 %v500
        %v608 = vunpack.c.h.b16 %v500
        %v609 = vunpack.c.l.b16 %v501
        %v610 = vunpack.c.h.b16 %v501
        %v611 = vunpack.c.l.b16 %v502
        %v612 = vunpack.c.h.b16 %v502
        %v613 = vunpack.c.l.b16 %v503
        %v614 = vunpack.c.h.b16 %v503
        %v615 = vunpack.c.l.b16 %v504
        %v616 = vunpack.c.h.b16 %v504
        %v617 = vunpack.c.l.b16 %v505
        %v618 = vunpack.c.h.b16 %v505
        %v619 = vunpack.c.l.b16 %v506
        %v620 = vunpack.c.h.b16 %v506
        %v621 = vunpack.c.l.b16 %v507
        %v622 = vunpack.c.h.b16 %v507
        %v623 = vunpack.c.l.b16 %v508
        %v624 = vunpack.c.h.b16 %v508
        %v625 = vunpack.c.l.b16 %v509
        %v626 = vunpack.c.h.b16 %v509
        %v627 = vunpack.c.l.b16 %v510
        %v628 = vunpack.c.h.b16 %v510
        %v629 = vunpack.c.l.b16 %v511
        %v630 = vunpack.c.h.b16 %v511
        %v631 = vunpack.c.l.b16 %v512
        %v632 = vunpack.c.h.b16 %v512
        %v633 = vunpack.c.l.b16 %v513
        %v634 = vunpack.c.h.b16 %v513
        %v635 = vunpack.c.l.b16 %v514
        %v636 = vunpack.c.h.b16 %v514
        %v637 = vunpack.c.l.b16 %v515
        %v638 = vunpack.c.h.b16 %v515
        %v639 = vunpack.c.l.b16 %v516
        %v640 = vunpack.c.h.b16 %v516
        %v641 = vunpack.c.l.b16 %v517
        %v642 = vunpack.c.h.b16 %v517
        %v643 = vunpack.c.l.b16 %v518
        %v644 = vunpack.c.h.b16 %v518
        %v645 = vunpack.c.l.b16 %v519
        %v646 = vunpack.c.h.b16 %v519
        %v647 = vunpack.c.l.b16 %v520
        %v648 = vunpack.c.h.b16 %v520
        %v649 = vunpack.c.l.b16 %v521
        %v650 = vunpack.c.h.b16 %v521
        %v651 = vunpack.c.l.b16 %v522
        %v652 = vunpack.c.h.b16 %v522
        %v653 = vunpack.c.l.b16 %v523
        %v654 = vunpack.c.h.b16 %v523
        %v655 = vunpack.c.l.b16 %v524
        %v656 = vunpack.c.h.b16 %v524
        %v657 = vunpack.c.l.b16 %v525
        %v658 = vunpack.c.h.b16 %v525
        %v659 = vunpack.c.l.b16 %v526
        %v660 = vunpack.c.h.b16 %v526
        %v661 = vunpack.c.l.b16 %v527
        %v662 = vunpack.c.h.b16 %v527
        %v663 = vunpack.c.l.b16 %v528
        %v664 = vunpack.c.h.b16 %v528
        %v665 = vpack.c.b16 %v603, %v601
        %v666 = vpack.c.b16 %v604, %v602
        %v667 = vpack.c.b16 %v607, %v605
        %v668 = vpack.c.b16 %v608, %v606
        %v669 = vpack.c.b16 %v611, %v609
        %v670 = vpack.c.b16 %v612, %v610
        %v671 = vpack.c.b16 %v615, %v613
        %v672 = vpack.c.b16 %v616, %v614
        %v673 = vpack.c.b16 %v619, %v617
        %v674 = vpack.c.b16 %v620, %v618
        %v675 = vpack.c.b16 %v623, %v621
        %v676 = vpack.c.b16 %v624, %v622
        %v677 = vpack.c.b16 %v627, %v625
        %v678 = vpack.c.b16 %v628, %v626
        %v679 = vpack.c.b16 %v631, %v629
        %v680 = vpack.c.b16 %v632, %v630
        %v681 = vpack.c.b16 %v635, %v633
        %v682 = vpack.c.b16 %v636, %v634
        %v683 = vpack.c.b16 %v639, %v637
        %v684 = vpack.c.b16 %v640, %v638
        %v685 = vpack.c.b16 %v643, %v641
        %v686 = vpack.c.b16 %v644, %v642
        %v687 = vpack.c.b16 %v647, %v645
        %v688 = vpack.c.b16 %v648, %v646
        %v689 = vpack.c.b16 %v651, %v649
        %v690 = vpack.c.b16 %v652, %v650
        %v691 = vpack.c.b16 %v655, %v653
        %v692 = vpack.c.b16 %v656, %v654
        %v693 = vpack.c.b16 %v659, %v657
        %v694 = vpack.c.b16 %v660, %v658
        %v695 = vpack.c.b16 %v663, %v661
        %v696 = vpack.c.b16 %v664, %v662
        %729 = vmatpush.bf16.msra.mxu0 %v679
        %730 = vmatpush.bf16.msra.mxu0 %v677
        %731 = vmatpush.bf16.msra.mxu0 %v675
        %732 = vmatpush.bf16.msra.mxu0 %v673
        %733 = vmatpush.bf16.msra.mxu0 %v671
        %734 = vmatpush.bf16.msra.mxu0 %v669
        %735 = vmatpush.bf16.msra.mxu0 %v667
        %736 = vmatpush.bf16.msra.mxu0 %v665
        %737 = vmatmul.bf16.gmra.mxu0 %v553
        %v738 = vpop.f32.mrf.mxu0
        %v739 = vadd.f32 0.0, %v738
        %v740 = vpop.f32.mrf.mxu0
        %v741 = vadd.f32 0.0, %v740
        %742 = vmatmul.bf16.gmra.mxu0 %v555
        %v743 = vpop.f32.mrf.mxu0
        %v744 = vadd.f32 0.0, %v743
        %v745 = vpop.f32.mrf.mxu0
        %v746 = vadd.f32 0.0, %v745
        %747 = vmatmul.bf16.gmra.mxu0 %v557
        %v748 = vpop.f32.mrf.mxu0
        %v749 = vadd.f32 0.0, %v748
        %v750 = vpop.f32.mrf.mxu0
        %v751 = vadd.f32 0.0, %v750
        %752 = vmatmul.bf16.gmra.mxu0 %v559
        %v753 = vpop.f32.mrf.mxu0
        %v754 = vadd.f32 0.0, %v753
        %v755 = vpop.f32.mrf.mxu0
        %v756 = vadd.f32 0.0, %v755
        %757 = vdwg.mxu0
        %758 = vmatpush.bf16.msra.mxu0 %v695
        %759 = vmatpush.bf16.msra.mxu0 %v693
        %760 = vmatpush.bf16.msra.mxu0 %v691
        %761 = vmatpush.bf16.msra.mxu0 %v689
        %762 = vmatpush.bf16.msra.mxu0 %v687
        %763 = vmatpush.bf16.msra.mxu0 %v685
        %764 = vmatpush.bf16.msra.mxu0 %v683
        %765 = vmatpush.bf16.msra.mxu0 %v681
        %766 = vmatmul.bf16.gmra.mxu0 %v554
        %v767 = vpop.f32.mrf.mxu0
        %v768 = vadd.f32 %v739, %v767
        %v769 = vpop.f32.mrf.mxu0
        %v770 = vadd.f32 %v741, %v769
        %771 = vmatmul.bf16.gmra.mxu0 %v556
        %v772 = vpop.f32.mrf.mxu0
        %v773 = vadd.f32 %v744, %v772
        %v774 = vpop.f32.mrf.mxu0
        %v775 = vadd.f32 %v746, %v774
        %776 = vmatmul.bf16.gmra.mxu0 %v558
        %v777 = vpop.f32.mrf.mxu0
        %v778 = vadd.f32 %v749, %v777
        %v779 = vpop.f32.mrf.mxu0
        %v780 = vadd.f32 %v751, %v779
        %781 = vmatmul.bf16.gmra.mxu0 %v560
        %v782 = vpop.f32.mrf.mxu0
        %v783 = vadd.f32 %v754, %v782
        %v784 = vpop.f32.mrf.mxu0
        %v785 = vadd.f32 %v756, %v784
        %786 = vdwg.mxu0
        %787 = vmatpush.bf16.msra.mxu0 %v680
        %788 = vmatpush.bf16.msra.mxu0 %v678
        %789 = vmatpush.bf16.msra.mxu0 %v676
        %790 = vmatpush.bf16.msra.mxu0 %v674
        %791 = vmatpush.bf16.msra.mxu0 %v672
        %792 = vmatpush.bf16.msra.mxu0 %v670
        %793 = vmatpush.bf16.msra.mxu0 %v668
        %794 = vmatpush.bf16.msra.mxu0 %v666
        %795 = vmatmul.bf16.gmra.mxu0 %v553
        %v796 = vpop.f32.mrf.mxu0
        %v797 = vadd.f32 0.0, %v796
        %v798 = vpop.f32.mrf.mxu0
        %v799 = vadd.f32 0.0, %v798
        %800 = vmatmul.bf16.gmra.mxu0 %v555
        %v801 = vpop.f32.mrf.mxu0
        %v802 = vadd.f32 0.0, %v801
        %v803 = vpop.f32.mrf.mxu0
        %v804 = vadd.f32 0.0, %v803
        %805 = vmatmul.bf16.gmra.mxu0 %v557
        %v806 = vpop.f32.mrf.mxu0
        %v807 = vadd.f32 0.0, %v806
        %v808 = vpop.f32.mrf.mxu0
        %v809 = vadd.f32 0.0, %v808
        %810 = vmatmul.bf16.gmra.mxu0 %v559
        %v811 = vpop.f32.mrf.mxu0
        %v812 = vadd.f32 0.0, %v811
        %v813 = vpop.f32.mrf.mxu0
        %v814 = vadd.f32 0.0, %v813
        %815 = vdwg.mxu0
        %816 = vmatpush.bf16.msra.mxu0 %v696
        %817 = vmatpush.bf16.msra.mxu0 %v694
        %818 = vmatpush.bf16.msra.mxu0 %v692
        %819 = vmatpush.bf16.msra.mxu0 %v690
        %820 = vmatpush.bf16.msra.mxu0 %v688
        %821 = vmatpush.bf16.msra.mxu0 %v686
        %822 = vmatpush.bf16.msra.mxu0 %v684
        %823 = vmatpush.bf16.msra.mxu0 %v682
        %824 = vmatmul.bf16.gmra.mxu0 %v554
        %v825 = vpop.f32.mrf.mxu0
        %v826 = vadd.f32 %v797, %v825
        %v827 = vpop.f32.mrf.mxu0
        %v828 = vadd.f32 %v799, %v827
        %829 = vmatmul.bf16.gmra.mxu0 %v556
        %v830 = vpop.f32.mrf.mxu0
        %v831 = vadd.f32 %v802, %v830
        %v832 = vpop.f32.mrf.mxu0
        %v833 = vadd.f32 %v804, %v832
        %834 = vmatmul.bf16.gmra.mxu0 %v558
        %v835 = vpop.f32.mrf.mxu0
        %v836 = vadd.f32 %v807, %v835
        %v837 = vpop.f32.mrf.mxu0
        %v838 = vadd.f32 %v809, %v837
        %839 = vmatmul.bf16.gmra.mxu0 %v560
        %v840 = vpop.f32.mrf.mxu0
        %v841 = vadd.f32 %v812, %v840
        %v842 = vpop.f32.mrf.mxu0
        %v843 = vadd.f32 %v814, %v842
        %844 = vdwg.mxu0
        %v845 = vpack.c.bf16 %v826, %v768
        %v846 = vpack.c.bf16 %v828, %v770
        %v847 = vpack.c.bf16 %v831, %v773
        %v848 = vpack.c.bf16 %v833, %v775
        %v849 = vpack.c.bf16 %v836, %v778
        %v850 = vpack.c.bf16 %v838, %v780
        %v851 = vpack.c.bf16 %v841, %v783
        %v852 = vpack.c.bf16 %v843, %v785
        %853 = vst [vmem:[%s259] sm:$0xff] %v845
        %854 = vst [vmem:[%s259 + $0x8] sm:$0xff] %v846
        %855 = vst [vmem:[%s259 + $0x10] sm:$0xff] %v847
        %856 = vst [vmem:[%s259 + $0x18] sm:$0xff] %v848
        %857 = vst [vmem:[%s259 + $0x20] sm:$0xff] %v849
        %858 = vst [vmem:[%s259 + $0x28] sm:$0xff] %v850
        %859 = vst [vmem:[%s259 + $0x30] sm:$0xff] %v851
        %860 = vst [vmem:[%s259 + $0x38] sm:$0xff] %v852
        %s861 = sand.u32 %s116, 1
        %s862 = scalar_lea.sflag [#allocation5], %s861
        %s863 = sand.u32 %s116, 1
        %s864 = smul.addr %s863, 64
        %s865 = scalar_lea.vmem [#allocation9], %s864
        // Predicated region
        $region49: #{tpu_custom_call.1} parent=31 // pred_check
          %p866 = pneg %p126
        $region50: #{tpu_custom_call.1} parent=31 // pred_check_branch
          %868 = sbr.rel (%p866) target = $region52
        $region51: #{tpu_custom_call.1} parent=31 // pred_region
          %s869 = smul.u32 8, %s25
          %s870 = smul.u32 2, %s26
          %872 = vsyncadd %s862, 0
          %s873 = smul.addr %s869, 6
          %s874 = sadd.s32 %s870, %s873
          %s875 = smul.addr %s874, 4
          %s876 = scalar_lea.hbm %s3, %s875
          %s877 = sshll.u32 %s865, 4
          %s878 = int_to_ptr.vmem [resolvable:$true] %s877
          %s879 = sshll.u32 %s876, 4
          %s880 = int_to_ptr.hbm [resolvable:$true] %s879
          %885 = dma.vmem_to_hbm [thread:$0]  %s878, 1024, %s880, %s862, 128, 384, 8
        $region52: #{tpu_custom_call.1} parent=31 // pred_fallthru
          _
      $region32: #{tpu_custom_call.1} parent=5 // pred_fallthru
        _
      %p886 = scmp.le.s32.totalorder 2, %s16
      // Predicated region
      $region53: #{tpu_custom_call.1} parent=5 // pred_check
        %p887 = pneg %p886
      $region54: #{tpu_custom_call.1} parent=5 // pred_check_branch
        %889 = sbr.rel (%p887) target = $region56
      $region55: #{tpu_custom_call.1} parent=5 // pred_region
        %s890 = ssub.s32 %s16, 2
        // Predicated region
        $region57: #{tpu_custom_call.1} parent=55 // pred_check
          %p891 = pneg %p132
        $region58: #{tpu_custom_call.1} parent=55 // pred_check_branch
          %893 = sbr.rel (%p891) target = $region60
        $region59: #{tpu_custom_call.1} parent=55 // pred_region
          %s894 = sand.u32 %s117, 1
          %s895 = scalar_lea.sflag [#allocation5], %s894
          %s896 = sand.u32 %s117, 1
          %s897 = smul.addr %s896, 64
          %s898 = scalar_lea.vmem [#allocation9], %s897
          %900 = dma.done %s895, 1024
        $region60: #{tpu_custom_call.1} parent=55 // pred_fallthru
          _
      $region56: #{tpu_custom_call.1} parent=5 // pred_fallthru
        _
    $region6: #{tpu_custom_call.1} parent=1 // loop_footer
      %s20 = sadd.s32 1, %s16
    $region7: #{tpu_custom_call.1} parent=1 // loop_footer_branch
      %15 = sbr.rel target = $region3
    $region8: #{tpu_custom_call.1} parent=1 // loop_exit
      _
    %901 = vsyncpa [#allocation4], 1
    %s902 = scalar_lea.sflag [#allocation4], 1
    %903 = vsyncpa %s902, 1
    %904 = vsyncpa [#allocation7], 1
    %905 = vsyncpa [#allocation5], 1
    %s906 = scalar_lea.sflag [#allocation5], 1
    %907 = vsyncpa %s906, 1

</llo_original>
